<compile_context>
chip_gen: v7x
topology: tpu7x:2x2x1
jax: 0.10.0
libtpu: 0.0.40
codegen_flags: <defaults>
</compile_context>

<pallas_src>
import functools

import jax
import jax.numpy as jnp
from jax.experimental import pallas as pl
from jax.experimental.pallas import tpu as pltpu

BN_EPS = 1e-5


def _round_up(v, m):
    return (v + m - 1) // m * m


def _conv_stats_kernel(x_ref, w_ref, masks_ref, conv_ref, stats_ref, stk_ref,
                       *, C, Cpad, KH, KW, P, W, M, B):
    """Pass 1: roll+mask im2col -> single MXU matmul -> conv output + BN partials.

    x_ref     : (1, B, Cpad, M)    B channel-padded image planes (lane axis = H*W)
    w_ref     : (C, KH*KW*Cpad)    conv weights, contraction-major, zero pad rows
    masks_ref : (KH*KW, M)         1.0 where tap (kh, kw) stays inside the image
    conv_ref  : (1, B, C, M)       conv output (bias-free, exact at every position)
    stats_ref : (1, 2*C, 1)        rows [0:C] per-channel sum, [C:2C] sum of squares
    stk_ref   : (KH*KW*Cpad, B*M)  VMEM im2col scratch
    """
    planes = [x_ref[0, b] for b in range(B)]            # each (Cpad, M)
    for kh in range(KH):
        for kw in range(KW):
            t = kh * KW + kw
            off = (kh - P) * W + (kw - P)                # flat tap offset
            shift = (-off) % M                           # tap[m] = x[m + off]
            mrow = masks_ref[t:t + 1, :]                 # (1, M)
            for b in range(B):
                src = planes[b] if shift == 0 else pltpu.roll(
                    planes[b], shift=shift, axis=1)
                # Full 8k-sublane, lane-aligned store (Cpad % 8 == 0, M % 128 == 0
                # at these shapes); roll wrap-around only lands on masked taps.
                stk_ref[t * Cpad:(t + 1) * Cpad, b * M:(b + 1) * M] = src * mrow
    # One MXU matmul, contraction dim = KH*KW*Cpad, lane axis = B*M.
    # TODO(synk): if C ever scales to >=128, tile output channels / contraction
    # to 128-multiples with a reduction grid axis instead of one un-tiled block.
    conv = jnp.dot(w_ref[...], stk_ref[...], preferred_element_type=jnp.float32)
    for b in range(B):
        conv_ref[0, b] = conv[:, b * M:(b + 1) * M]
    # Every stored position is a valid output (masks already zeroed the
    # out-of-image taps), so no validity mask is needed for the statistics.
    stats_ref[0, 0:C, :] = jnp.sum(conv, axis=1, keepdims=True)
    stats_ref[0, C:2 * C, :] = jnp.sum(conv * conv, axis=1, keepdims=True)


def _bn_res_kernel(conv_ref, x_ref, scale_ref, shift_ref, o_ref, *, C):
    """Pass 2: purely element-wise folded BN (conv*scale + shift) + residual."""
    scale = scale_ref[...].reshape(1, 1, C, 1)
    shift = shift_ref[...].reshape(1, 1, C, 1)
    o_ref[...] = conv_ref[...] * scale + shift + x_ref[...]


@functools.partial(jax.jit, static_argnames=("padding",))
def resblock_forward(x, w, b, gamma, beta, *, padding=1):
    """x: (N, Cin, H, W) NCHW.  w: (Cout, Cin, KH, KW) (PyTorch OIHW layout).

    The conv bias `b` is accepted for API parity but unused: training-mode
    BatchNorm (batch statistics) immediately follows the conv with nothing in
    between, so its mean subtraction cancels the bias exactly.  Re-introduce
    the bias if running statistics or an activation before BN are ever added.
    """
    del b
    N, Cin, H, W = x.shape
    Cout, _, KH, KW = w.shape
    P = padding
    Ho = H + 2 * P - KH + 1
    Wo = W + 2 * P - KW + 1
    assert (Ho, Wo) == (H, W) and Cin == Cout, "residual add needs matching shapes"
    C = Cout
    Cpad = _round_up(C, 8)            # 8-sublane-aligned tap strips
    M = H * W                         # flat spatial axis (lane axis)

    # Grid policy: pack B images per grid step along the lane axis, but keep
    # >= 2 "parallel" steps when N is even so both v7x TensorCores stay busy;
    # on v5e/v6e the grid is a serial loop, so packing just shrinks overhead.
    num_steps = 2 if (N >= 2 and N % 2 == 0) else 1
    B = N // num_steps

    x32 = x.astype(jnp.float32)
    # Channel-pad once (zeros) so each tap-strip write is a full 8-sublane store.
    xc = jnp.pad(x32, ((0, 0), (0, Cpad - C), (0, 0), (0, 0)))
    xc = xc.reshape(num_steps, B, Cpad, M)
    x_res = x32.reshape(num_steps, B, C, M)          # residual input (free reshape)

    # Weights: (Cout, Cin, KH, KW) -> (Cout, KH*KW*Cpad), row order t*Cpad + cin,
    # with zero columns at the padded channel positions.
    w_r = jnp.transpose(w.astype(jnp.float32), (2, 3, 1, 0))      # (KH, KW, Cin, Cout)
    w_r = jnp.pad(w_r, ((0, 0), (0, 0), (0, Cpad - C), (0, 0)))   # (KH, KW, Cpad, Cout)
    w_mat = w_r.reshape(KH * KW * Cpad, C).T                      # (C, KH*KW*Cpad)

    # Per-tap validity masks over the flat H*W plane (implicit zero padding of
    # the conv); also neutralize the lane wrap-around introduced by pltpu.roll.
    hh = jnp.arange(H)
    ww = jnp.arange(W)
    rows = []
    for kh in range(KH):
        for kw in range(KW):
            dh, dw = kh - P, kw - P
            mh = (hh + dh >= 0) & (hh + dh < H)
            mw = (ww + dw >= 0) & (ww + dw < W)
            rows.append((mh[:, None] & mw[None, :]).reshape(M))
    masks = jnp.stack(rows).astype(jnp.float32)                    # (KH*KW, M)

    # Per-step VMEM working set here is ~0.2 MiB (scratch 9*Cpad*B*M*4 B plus
    # double-buffered in/out blocks), so the 32 MiB cap is irrelevant and safe
    # on every generation.  When scaling C/H/W/B: keep the per-step footprint
    # <= ~24 MiB on v7x (64 MiB physical VMEM) by tiling the flat spatial axis,
    # and raise the cap towards 64-100 MiB on v5e/v6e (128 MiB VMEM).
    cparams = pltpu.CompilerParams(
        dimension_semantics=("parallel",),
        vmem_limit_bytes=32 * 1024 * 1024,
    )

    # ---- pass 1: conv (single matmul over roll+mask im2col) + BN partials ----
    conv_out, stats = pl.pallas_call(
        functools.partial(_conv_stats_kernel, C=C, Cpad=Cpad, KH=KH, KW=KW,
                          P=P, W=W, M=M, B=B),
        grid=(num_steps,),
        in_specs=[
            pl.BlockSpec((1, B, Cpad, M), lambda n: (n, 0, 0, 0)),
            pl.BlockSpec((C, KH * KW * Cpad), lambda n: (0, 0)),
            pl.BlockSpec((KH * KW, M), lambda n: (0, 0)),
        ],
        out_specs=[
            pl.BlockSpec((1, B, C, M), lambda n: (n, 0, 0, 0)),
            pl.BlockSpec((1, 2 * C, 1), lambda n: (n, 0, 0)),
        ],
        out_shape=[
            jax.ShapeDtypeStruct((num_steps, B, C, M), jnp.float32),
            jax.ShapeDtypeStruct((num_steps, 2 * C, 1), jnp.float32),
        ],
        scratch_shapes=[pltpu.VMEM((KH * KW * Cpad, B * M), jnp.float32)],
        compiler_params=cparams,
    )(xc, w_mat, masks)

    # ---- fold batch statistics into per-channel scale / shift (tiny, f32) ----
    cnt = float(N * M)
    tot = jnp.sum(stats[:, :C, 0], axis=0)        # (C,)
    tot2 = jnp.sum(stats[:, C:, 0], axis=0)       # (C,)
    mean = tot / cnt
    # NOTE: single-pass E[x^2] - E[x]^2 variance; fine at 5e-3 tolerance for
    # these magnitudes — switch to a shifted/two-pass variance if |mean| can be
    # much larger than the std or tolerances tighten.
    var = jnp.maximum(tot2 / cnt - mean * mean, 0.0)   # biased (training-mode)
    inv = jax.lax.rsqrt(var + BN_EPS)
    g32 = gamma.astype(jnp.float32)
    scale = (g32 * inv).reshape(C, 1)
    shift = (beta.astype(jnp.float32) - mean * g32 * inv).reshape(C, 1)

    # ---- pass 2: element-wise BN + residual (no im2col / matmul recompute) ----
    out = pl.pallas_call(
        functools.partial(_bn_res_kernel, C=C),
        grid=(num_steps,),
        in_specs=[
            pl.BlockSpec((1, B, C, M), lambda n: (n, 0, 0, 0)),
            pl.BlockSpec((1, B, C, M), lambda n: (n, 0, 0, 0)),
            pl.BlockSpec((C, 1), lambda n: (0, 0)),
            pl.BlockSpec((C, 1), lambda n: (0, 0)),
        ],
        out_specs=pl.BlockSpec((1, B, C, M), lambda n: (n, 0, 0, 0)),
        out_shape=jax.ShapeDtypeStruct((num_steps, B, C, M), jnp.float32),
        compiler_params=cparams,
    )(conv_out, x_res, scale, shift)

    # Free reshape back to NCHW; no pad/crop HBM passes anywhere.
    return out.reshape(N, C, H, W)


def resblock_reference(x, w, b, gamma, beta, *, padding=1):
    """Pure-JAX reference mirroring the PyTorch forward (training-mode BN)."""
    conv = jax.lax.conv_general_dilated(
        x, w, window_strides=(1, 1), padding=[(padding, padding)] * 2,
        dimension_numbers=("NCHW", "OIHW", "NCHW"),
    ) + b.reshape(1, -1, 1, 1)
    mean = jnp.mean(conv, axis=(0, 2, 3), keepdims=True)
    var = jnp.mean((conv - mean) ** 2, axis=(0, 2, 3), keepdims=True)
    bn = (conv - mean) * jax.lax.rsqrt(var + BN_EPS)
    bn = bn * gamma.reshape(1, -1, 1, 1) + beta.reshape(1, -1, 1, 1)
    return bn + x


if __name__ == "__main__":
    # ResBlock(in_channel_=4, out_channel_=4, kernel_size_=3, padding_=1)
    N, C, H, W = 2, 4, 16, 16
    K, PAD = 3, 1

    key = jax.random.PRNGKey(0)
    kx, kwt, kb, kg, kbeta = jax.random.split(key, 5)

    x = jax.random.normal(kx, (N, C, H, W), dtype=jnp.float32)
    conv_w = 0.1 * jax.random.normal(kwt, (C, C, K, K), dtype=jnp.float32)
    conv_b = 0.1 * jax.random.normal(kb, (C,), dtype=jnp.float32)
    bn_gamma = 1.0 + 0.1 * jax.random.normal(kg, (C,), dtype=jnp.float32)
    bn_beta = 0.1 * jax.random.normal(kbeta, (C,), dtype=jnp.float32)

    out = resblock_forward(x, conv_w, conv_b, bn_gamma, bn_beta, padding=PAD)
    out = jax.block_until_ready(out)

    ref = resblock_reference(x, conv_w, conv_b, bn_gamma, bn_beta, padding=PAD)
    assert out.shape == (N, C, H, W)
    assert jnp.allclose(out, ref, rtol=5e-3, atol=5e-3), "mismatch vs reference"

    print("KERNEL_OK")
</pallas_src>

<mosaic_0001>
module attributes {stable_mosaic.version = 11 : i64} {
  func.func @_conv_stats_kernel(%arg0: i32, %arg1: memref<1x1x8x256xf32, #tpu.memory_space<vmem>>, %arg2: memref<4x72xf32, #tpu.memory_space<vmem>>, %arg3: memref<9x256xf32, #tpu.memory_space<vmem>>, %arg4: memref<1x1x4x256xf32, #tpu.memory_space<vmem>>, %arg5: memref<1x8x1xf32, #tpu.memory_space<vmem>>, %arg6: memref<72x256xf32, #tpu.memory_space<vmem>>) attributes {dimension_semantics = [#tpu.dimension_semantics<parallel>], iteration_bounds = array<i64: 2>, scalar_prefetch = 0 : i64, scratch_operands = 1 : i64, tpu.core_type = #tpu.core_type<tc>, window_params = [{transform_indices = @transform_0, window_bounds = array<i64: 1, 1, 8, 256>}, {pipeline_mode = #tpu.pipeline_mode<synchronous>, transform_indices = @transform_1, window_bounds = array<i64: 4, 72>}, {pipeline_mode = #tpu.pipeline_mode<synchronous>, transform_indices = @transform_2, window_bounds = array<i64: 9, 256>}, {transform_indices = @transform_3, window_bounds = array<i64: 1, 1, 4, 256>}, {transform_indices = @transform_4, window_bounds = array<i64: 1, 8, 1>}]} {
    %c0 = arith.constant 0 : index
    %c0_0 = arith.constant 0 : index
    %c0_1 = arith.constant 0 : index
    %c0_2 = arith.constant 0 : index
    %0 = vector.load %arg1[%c0, %c0_0, %c0_1, %c0_2] : memref<1x1x8x256xf32, #tpu.memory_space<vmem>>, vector<1x1x8x256xf32>
    %1 = vector.shape_cast %0 : vector<1x1x8x256xf32> to vector<8x256xf32>
    %c0_3 = arith.constant 0 : index
    %c0_4 = arith.constant 0 : index
    %2 = vector.load %arg3[%c0_3, %c0_4] : memref<9x256xf32, #tpu.memory_space<vmem>>, vector<1x256xf32>
    %c17_i32 = arith.constant 17 : i32
    %3 = tpu.dynamic_rotate %1 by %c17_i32 dim 1 : vector<8x256xf32>, i32 -> vector<8x256xf32>
    %4 = vector.broadcast %2 : vector<1x256xf32> to vector<8x256xf32>
    %5 = arith.mulf %3, %4 : vector<8x256xf32>
    %c0_5 = arith.constant 0 : index
    %c0_6 = arith.constant 0 : index
    %6 = vector.load %arg6[%c0_5, %c0_6] : memref<72x256xf32, #tpu.memory_space<vmem>>, vector<8x256xf32>
    tpu.vector_store %arg6[%c0_5, %c0_6], %5 {strides = array<i32>} : memref<72x256xf32, #tpu.memory_space<vmem>>, vector<8x256xf32>,
    %c1 = arith.constant 1 : index
    %c0_7 = arith.constant 0 : index
    %7 = vector.load %arg3[%c1, %c0_7] : memref<9x256xf32, #tpu.memory_space<vmem>>, vector<1x256xf32>
    %c16_i32 = arith.constant 16 : i32
    %8 = tpu.dynamic_rotate %1 by %c16_i32 dim 1 : vector<8x256xf32>, i32 -> vector<8x256xf32>
    %9 = vector.broadcast %7 : vector<1x256xf32> to vector<8x256xf32>
    %10 = arith.mulf %8, %9 : vector<8x256xf32>
    %c8 = arith.constant 8 : index
    %c0_8 = arith.constant 0 : index
    %11 = vector.load %arg6[%c8, %c0_8] : memref<72x256xf32, #tpu.memory_space<vmem>>, vector<8x256xf32>
    tpu.vector_store %arg6[%c8, %c0_8], %10 {strides = array<i32>} : memref<72x256xf32, #tpu.memory_space<vmem>>, vector<8x256xf32>,
    %c2 = arith.constant 2 : index
    %c0_9 = arith.constant 0 : index
    %12 = vector.load %arg3[%c2, %c0_9] : memref<9x256xf32, #tpu.memory_space<vmem>>, vector<1x256xf32>
    %c15_i32 = arith.constant 15 : i32
    %13 = tpu.dynamic_rotate %1 by %c15_i32 dim 1 : vector<8x256xf32>, i32 -> vector<8x256xf32>
    %14 = vector.broadcast %12 : vector<1x256xf32> to vector<8x256xf32>
    %15 = arith.mulf %13, %14 : vector<8x256xf32>
    %c16 = arith.constant 16 : index
    %c0_10 = arith.constant 0 : index
    %16 = vector.load %arg6[%c16, %c0_10] : memref<72x256xf32, #tpu.memory_space<vmem>>, vector<8x256xf32>
    tpu.vector_store %arg6[%c16, %c0_10], %15 {strides = array<i32>} : memref<72x256xf32, #tpu.memory_space<vmem>>, vector<8x256xf32>,
    %c3 = arith.constant 3 : index
    %c0_11 = arith.constant 0 : index
    %17 = vector.load %arg3[%c3, %c0_11] : memref<9x256xf32, #tpu.memory_space<vmem>>, vector<1x256xf32>
    %c1_i32 = arith.constant 1 : i32
    %18 = tpu.dynamic_rotate %1 by %c1_i32 dim 1 : vector<8x256xf32>, i32 -> vector<8x256xf32>
    %19 = vector.broadcast %17 : vector<1x256xf32> to vector<8x256xf32>
    %20 = arith.mulf %18, %19 : vector<8x256xf32>
    %c24 = arith.constant 24 : index
    %c0_12 = arith.constant 0 : index
    %21 = vector.load %arg6[%c24, %c0_12] : memref<72x256xf32, #tpu.memory_space<vmem>>, vector<8x256xf32>
    tpu.vector_store %arg6[%c24, %c0_12], %20 {strides = array<i32>} : memref<72x256xf32, #tpu.memory_space<vmem>>, vector<8x256xf32>,
    %c4 = arith.constant 4 : index
    %c0_13 = arith.constant 0 : index
    %22 = vector.load %arg3[%c4, %c0_13] : memref<9x256xf32, #tpu.memory_space<vmem>>, vector<1x256xf32>
    %23 = vector.broadcast %22 : vector<1x256xf32> to vector<8x256xf32>
    %24 = arith.mulf %1, %23 : vector<8x256xf32>
    %c32 = arith.constant 32 : index
    %c0_14 = arith.constant 0 : index
    %25 = vector.load %arg6[%c32, %c0_14] : memref<72x256xf32, #tpu.memory_space<vmem>>, vector<8x256xf32>
    tpu.vector_store %arg6[%c32, %c0_14], %24 {strides = array<i32>} : memref<72x256xf32, #tpu.memory_space<vmem>>, vector<8x256xf32>,
    %c5 = arith.constant 5 : index
    %c0_15 = arith.constant 0 : index
    %26 = vector.load %arg3[%c5, %c0_15] : memref<9x256xf32, #tpu.memory_space<vmem>>, vector<1x256xf32>
    %c255_i32 = arith.constant 255 : i32
    %27 = tpu.dynamic_rotate %1 by %c255_i32 dim 1 : vector<8x256xf32>, i32 -> vector<8x256xf32>
    %28 = vector.broadcast %26 : vector<1x256xf32> to vector<8x256xf32>
    %29 = arith.mulf %27, %28 : vector<8x256xf32>
    %c40 = arith.constant 40 : index
    %c0_16 = arith.constant 0 : index
    %30 = vector.load %arg6[%c40, %c0_16] : memref<72x256xf32, #tpu.memory_space<vmem>>, vector<8x256xf32>
    tpu.vector_store %arg6[%c40, %c0_16], %29 {strides = array<i32>} : memref<72x256xf32, #tpu.memory_space<vmem>>, vector<8x256xf32>,
    %c6 = arith.constant 6 : index
    %c0_17 = arith.constant 0 : index
    %31 = vector.load %arg3[%c6, %c0_17] : memref<9x256xf32, #tpu.memory_space<vmem>>, vector<1x256xf32>
    %c241_i32 = arith.constant 241 : i32
    %32 = tpu.dynamic_rotate %1 by %c241_i32 dim 1 : vector<8x256xf32>, i32 -> vector<8x256xf32>
    %33 = vector.broadcast %31 : vector<1x256xf32> to vector<8x256xf32>
    %34 = arith.mulf %32, %33 : vector<8x256xf32>
    %c48 = arith.constant 48 : index
    %c0_18 = arith.constant 0 : index
    %35 = vector.load %arg6[%c48, %c0_18] : memref<72x256xf32, #tpu.memory_space<vmem>>, vector<8x256xf32>
    tpu.vector_store %arg6[%c48, %c0_18], %34 {strides = array<i32>} : memref<72x256xf32, #tpu.memory_space<vmem>>, vector<8x256xf32>,
    %c7 = arith.constant 7 : index
    %c0_19 = arith.constant 0 : index
    %36 = vector.load %arg3[%c7, %c0_19] : memref<9x256xf32, #tpu.memory_space<vmem>>, vector<1x256xf32>
    %c240_i32 = arith.constant 240 : i32
    %37 = tpu.dynamic_rotate %1 by %c240_i32 dim 1 : vector<8x256xf32>, i32 -> vector<8x256xf32>
    %38 = vector.broadcast %36 : vector<1x256xf32> to vector<8x256xf32>
    %39 = arith.mulf %37, %38 : vector<8x256xf32>
    %c56 = arith.constant 56 : index
    %c0_20 = arith.constant 0 : index
    %40 = vector.load %arg6[%c56, %c0_20] : memref<72x256xf32, #tpu.memory_space<vmem>>, vector<8x256xf32>
    tpu.vector_store %arg6[%c56, %c0_20], %39 {strides = array<i32>} : memref<72x256xf32, #tpu.memory_space<vmem>>, vector<8x256xf32>,
    %c8_21 = arith.constant 8 : index
    %c0_22 = arith.constant 0 : index
    %41 = vector.load %arg3[%c8_21, %c0_22] : memref<9x256xf32, #tpu.memory_space<vmem>>, vector<1x256xf32>
    %c239_i32 = arith.constant 239 : i32
    %42 = tpu.dynamic_rotate %1 by %c239_i32 dim 1 : vector<8x256xf32>, i32 -> vector<8x256xf32>
    %43 = vector.broadcast %41 : vector<1x256xf32> to vector<8x256xf32>
    %44 = arith.mulf %42, %43 : vector<8x256xf32>
    %c64 = arith.constant 64 : index
    %c0_23 = arith.constant 0 : index
    %45 = vector.load %arg6[%c64, %c0_23] : memref<72x256xf32, #tpu.memory_space<vmem>>, vector<8x256xf32>
    tpu.vector_store %arg6[%c64, %c0_23], %44 {strides = array<i32>} : memref<72x256xf32, #tpu.memory_space<vmem>>, vector<8x256xf32>,
    %c0_24 = arith.constant 0 : index
    %c0_25 = arith.constant 0 : index
    %46 = vector.load %arg2[%c0_24, %c0_25] : memref<4x72xf32, #tpu.memory_space<vmem>>, vector<4x72xf32>
    %c0_26 = arith.constant 0 : index
    %c0_27 = arith.constant 0 : index
    %47 = vector.load %arg6[%c0_26, %c0_27] : memref<72x256xf32, #tpu.memory_space<vmem>>, vector<72x256xf32>
    %cst = arith.constant dense<0.000000e+00> : vector<4x256xf32>
    %48 = tpu.matmul %46, %47, %cst {dimension_numbers = #tpu.dot_dimension_numbers<[1], [0], [0], [1], [0, 0, 1, 1], [], []>} : vector<4x72xf32>, vector<72x256xf32>, vector<4x256xf32> -> vector<4x256xf32>
    %c0_28 = arith.constant 0 : index
    %c0_29 = arith.constant 0 : index
    %c0_30 = arith.constant 0 : index
    %c0_31 = arith.constant 0 : index
    %49 = vector.load %arg4[%c0_28, %c0_29, %c0_30, %c0_31] : memref<1x1x4x256xf32, #tpu.memory_space<vmem>>, vector<1x1x4x256xf32>
    %50 = vector.shape_cast %49 : vector<1x1x4x256xf32> to vector<4x256xf32>
    %51 = vector.shape_cast %48 : vector<4x256xf32> to vector<1x1x4x256xf32>
    tpu.vector_store %arg4[%c0_28, %c0_29, %c0_30, %c0_31], %51 {strides = array<i32>} : memref<1x1x4x256xf32, #tpu.memory_space<vmem>>, vector<1x1x4x256xf32>,
    %cst_32 = arith.constant dense<0.000000e+00> : vector<4xf32>
    %52 = vector.multi_reduction <add>, %48, %cst_32 [1] : vector<4x256xf32> to vector<4xf32>
    %53 = vector.shape_cast %52 : vector<4xf32> to vector<4x1xf32>
    %c0_33 = arith.constant 0 : index
    %c0_34 = arith.constant 0 : index
    %c0_35 = arith.constant 0 : index
    %54 = vector.load %arg5[%c0_33, %c0_34, %c0_35] : memref<1x8x1xf32, #tpu.memory_space<vmem>>, vector<1x4x1xf32>
    %55 = vector.shape_cast %54 : vector<1x4x1xf32> to vector<4x1xf32>
    %56 = vector.shape_cast %53 : vector<4x1xf32> to vector<1x4x1xf32>
    tpu.vector_store %arg5[%c0_33, %c0_34, %c0_35], %56 {strides = array<i32>} : memref<1x8x1xf32, #tpu.memory_space<vmem>>, vector<1x4x1xf32>,
    %57 = arith.mulf %48, %48 : vector<4x256xf32>
    %cst_36 = arith.constant dense<0.000000e+00> : vector<4xf32>
    %58 = vector.multi_reduction <add>, %57, %cst_36 [1] : vector<4x256xf32> to vector<4xf32>
    %59 = vector.shape_cast %58 : vector<4xf32> to vector<4x1xf32>
    %c0_37 = arith.constant 0 : index
    %c4_38 = arith.constant 4 : index
    %c0_39 = arith.constant 0 : index
    %60 = vector.load %arg5[%c0_37, %c4_38, %c0_39] : memref<1x8x1xf32, #tpu.memory_space<vmem>>, vector<1x4x1xf32>
    %61 = vector.shape_cast %60 : vector<1x4x1xf32> to vector<4x1xf32>
    %62 = vector.shape_cast %59 : vector<4x1xf32> to vector<1x4x1xf32>
    tpu.vector_store %arg5[%c0_37, %c4_38, %c0_39], %62 {strides = array<i32>} : memref<1x8x1xf32, #tpu.memory_space<vmem>>, vector<1x4x1xf32>,
    return
  }
  func.func @transform_0(%arg0: i32) -> (i32, i32, i32, i32) {
    %c0_i32 = arith.constant 0 : i32
    %c0_i32_0 = arith.constant 0 : i32
    %c0_i32_1 = arith.constant 0 : i32
    %c0_i32_2 = arith.constant 0 : i32
    return %arg0, %c0_i32, %c0_i32_0, %c0_i32_1 : i32, i32, i32, i32
  }
  func.func @transform_1(%arg0: i32) -> (i32, i32) {
    %c0_i32 = arith.constant 0 : i32
    %c0_i32_0 = arith.constant 0 : i32
    %c0_i32_1 = arith.constant 0 : i32
    return %c0_i32, %c0_i32_0 : i32, i32
  }
  func.func @transform_2(%arg0: i32) -> (i32, i32) {
    %c0_i32 = arith.constant 0 : i32
    %c0_i32_0 = arith.constant 0 : i32
    %c0_i32_1 = arith.constant 0 : i32
    return %c0_i32, %c0_i32_0 : i32, i32
  }
  func.func @transform_3(%arg0: i32) -> (i32, i32, i32, i32) {
    %c0_i32 = arith.constant 0 : i32
    %c0_i32_0 = arith.constant 0 : i32
    %c0_i32_1 = arith.constant 0 : i32
    %c0_i32_2 = arith.constant 0 : i32
    return %arg0, %c0_i32, %c0_i32_0, %c0_i32_1 : i32, i32, i32, i32
  }
  func.func @transform_4(%arg0: i32) -> (i32, i32, i32) {
    %c0_i32 = arith.constant 0 : i32
    %c0_i32_0 = arith.constant 0 : i32
    %c0_i32_1 = arith.constant 0 : i32
    return %arg0, %c0_i32, %c0_i32_0 : i32, i32, i32
  }
}

module attributes {stable_mosaic.version = 11 : i64} {
  func.func @_bn_res_kernel(%arg0: i32, %arg1: memref<1x1x4x256xf32, #tpu.memory_space<vmem>>, %arg2: memref<1x1x4x256xf32, #tpu.memory_space<vmem>>, %arg3: memref<4x1xf32, #tpu.memory_space<vmem>>, %arg4: memref<4x1xf32, #tpu.memory_space<vmem>>, %arg5: memref<1x1x4x256xf32, #tpu.memory_space<vmem>>) attributes {dimension_semantics = [#tpu.dimension_semantics<parallel>], iteration_bounds = array<i64: 2>, scalar_prefetch = 0 : i64, scratch_operands = 0 : i64, tpu.core_type = #tpu.core_type<tc>, window_params = [{transform_indices = @transform_0, window_bounds = array<i64: 1, 1, 4, 256>}, {transform_indices = @transform_1, window_bounds = array<i64: 1, 1, 4, 256>}, {pipeline_mode = #tpu.pipeline_mode<synchronous>, transform_indices = @transform_2, window_bounds = array<i64: 4, 1>}, {pipeline_mode = #tpu.pipeline_mode<synchronous>, transform_indices = @transform_3, window_bounds = array<i64: 4, 1>}, {transform_indices = @transform_4, window_bounds = array<i64: 1, 1, 4, 256>}]} {
    %c0 = arith.constant 0 : index
    %c0_0 = arith.constant 0 : index
    %0 = vector.load %arg3[%c0, %c0_0] : memref<4x1xf32, #tpu.memory_space<vmem>>, vector<4x1xf32>
    %1 = vector.shape_cast %0 : vector<4x1xf32> to vector<1x1x4x1xf32>
    %c0_1 = arith.constant 0 : index
    %c0_2 = arith.constant 0 : index
    %2 = vector.load %arg4[%c0_1, %c0_2] : memref<4x1xf32, #tpu.memory_space<vmem>>, vector<4x1xf32>
    %3 = vector.shape_cast %2 : vector<4x1xf32> to vector<1x1x4x1xf32>
    %c0_3 = arith.constant 0 : index
    %c0_4 = arith.constant 0 : index
    %c0_5 = arith.constant 0 : index
    %c0_6 = arith.constant 0 : index
    %4 = vector.load %arg1[%c0_3, %c0_4, %c0_5, %c0_6] : memref<1x1x4x256xf32, #tpu.memory_space<vmem>>, vector<1x1x4x256xf32>
    %5 = vector.broadcast %1 : vector<1x1x4x1xf32> to vector<1x1x4x256xf32>
    %6 = arith.mulf %4, %5 : vector<1x1x4x256xf32>
    %7 = vector.broadcast %3 : vector<1x1x4x1xf32> to vector<1x1x4x256xf32>
    %8 = arith.addf %6, %7 : vector<1x1x4x256xf32>
    %c0_7 = arith.constant 0 : index
    %c0_8 = arith.constant 0 : index
    %c0_9 = arith.constant 0 : index
    %c0_10 = arith.constant 0 : index
    %9 = vector.load %arg2[%c0_7, %c0_8, %c0_9, %c0_10] : memref<1x1x4x256xf32, #tpu.memory_space<vmem>>, vector<1x1x4x256xf32>
    %10 = arith.addf %8, %9 : vector<1x1x4x256xf32>
    %c0_11 = arith.constant 0 : index
    %c0_12 = arith.constant 0 : index
    %c0_13 = arith.constant 0 : index
    %c0_14 = arith.constant 0 : index
    %11 = vector.load %arg5[%c0_11, %c0_12, %c0_13, %c0_14] : memref<1x1x4x256xf32, #tpu.memory_space<vmem>>, vector<1x1x4x256xf32>
    tpu.vector_store %arg5[%c0_11, %c0_12, %c0_13, %c0_14], %10 {strides = array<i32>} : memref<1x1x4x256xf32, #tpu.memory_space<vmem>>, vector<1x1x4x256xf32>,
    return
  }
  func.func @transform_0(%arg0: i32) -> (i32, i32, i32, i32) {
    %c0_i32 = arith.constant 0 : i32
    %c0_i32_0 = arith.constant 0 : i32
    %c0_i32_1 = arith.constant 0 : i32
    %c0_i32_2 = arith.constant 0 : i32
    return %arg0, %c0_i32, %c0_i32_0, %c0_i32_1 : i32, i32, i32, i32
  }
  func.func @transform_1(%arg0: i32) -> (i32, i32, i32, i32) {
    %c0_i32 = arith.constant 0 : i32
    %c0_i32_0 = arith.constant 0 : i32
    %c0_i32_1 = arith.constant 0 : i32
    %c0_i32_2 = arith.constant 0 : i32
    return %arg0, %c0_i32, %c0_i32_0, %c0_i32_1 : i32, i32, i32, i32
  }
  func.func @transform_2(%arg0: i32) -> (i32, i32) {
    %c0_i32 = arith.constant 0 : i32
    %c0_i32_0 = arith.constant 0 : i32
    %c0_i32_1 = arith.constant 0 : i32
    return %c0_i32, %c0_i32_0 : i32, i32
  }
  func.func @transform_3(%arg0: i32) -> (i32, i32) {
    %c0_i32 = arith.constant 0 : i32
    %c0_i32_0 = arith.constant 0 : i32
    %c0_i32_1 = arith.constant 0 : i32
    return %c0_i32, %c0_i32_0 : i32, i32
  }
  func.func @transform_4(%arg0: i32) -> (i32, i32, i32, i32) {
    %c0_i32 = arith.constant 0 : i32
    %c0_i32_0 = arith.constant 0 : i32
    %c0_i32_1 = arith.constant 0 : i32
    %c0_i32_2 = arith.constant 0 : i32
    return %arg0, %c0_i32, %c0_i32_0, %c0_i32_1 : i32, i32, i32, i32
  }
}

</mosaic_0001>

<llo_original>
// kernel: resblock_forward.3
$region0: #{resblock_forward.3}
  #allocation0 [shape = 'u32[]', space=smem, size = 0x4, offset = 0x4, fixed_abs, tag = 'smem constant byte address 0x4 - core index']
  #allocation1 [shape = 'u32[144,128]{1,0:T(1,128)}', space=vmem, size = 0x12000, scoped, tag = 'internal scratch']
  %s0 = inlined_call_operand.vmem [shape: f32[2,1,4,256], index: 0, kind: input, shape index: {}]
  %s1 = inlined_call_operand.vmem [shape: f32[2,1,4,256], index: 1, kind: input, shape index: {}]
  %s2 = inlined_call_operand.vmem [shape: f32[4,1], index: 2, kind: input, shape index: {}]
  %s3 = inlined_call_operand.vmem [shape: f32[4,1], index: 3, kind: input, shape index: {}]
  %s4 = inlined_call_operand.vmem [shape: f32[2,1,4,256], index: 4, kind: output, shape index: {}]
  %s5 = sld [smem:[#allocation0]]
  $region49: #{resblock_forward.3} parent=0
    _
  %s7 = ssub.s32 1, %s5
  %s8 = scalar_select 0, %s7, %s5
  loop: start=0, step=1, limit=4
  $region2: #{resblock_forward.3} parent=0 // loop_pre_header
    _
  $region3: #{resblock_forward.3} parent=0 // loop_header
    %s10 = sphi 0, %s14
    %p11 = scmp.ge.s32.totalorder %s10, 4
    %s20 = sphi 0, %s22
    %s23 = sphi 0, %s20
    %s24 = sphi 0, %s23
    %s40 = sphi 0, %s24
    %s46 = sphi 0, %s48
    %s49 = sphi 0, %s46
    %s50 = sphi 0, %s49
    %s66 = sphi 0, %s50
    %s70 = sphi 0, %s70
    %s72 = sphi 0, %s70
    %s73 = sphi 0, %s72
    %s87 = sphi 0, %s73
    %s91 = sphi 0, %s91
    %s93 = sphi 0, %s91
    %s94 = sphi 0, %s93
    %s108 = sphi 0, %s94
    %s114 = sphi 0, %s116
    %s117 = sphi 0, %s114
    %s118 = sphi 0, %s117
    %s134 = sphi 0, %s118
  $region4: #{resblock_forward.3} parent=0 // loop_header_branch
    %13 = sbr.rel (%p11) target = $region8
  $region5: #{resblock_forward.3} parent=0 // loop_body
    %s15 = ssub.s32 %s10, 1
    %s16 = ssub.s32 %s10, 2
    %s17 = sadd.s32 %s10, 1
    %s18 = ssub.s32 %s10, %s17
    %p19 = scmp.eq.s32.totalorder %s18, 0
    %s21 = sadd.s32 %s20, 1
    %s22 = scalar_select %p19, %s20, %s21
    %p25 = pneg %p19
    %p26 = scmp.eq.s32.totalorder %s10, 1
    %p27 = por %p25, %p26
    %p28 = scmp.ne.s32.totalorder %s20, %s23
    %p29 = scmp.eq.s32.totalorder %s10, 0
    %p30 = por %p28, %p29
    %p31 = scmp.ne.s32.totalorder %s20, %s23
    %p32 = scmp.eq.s32.totalorder %s15, 1
    %p33 = por %p31, %p32
    %p34 = scmp.ne.s32.totalorder %s23, %s24
    %p35 = scmp.eq.s32.totalorder %s15, 0
    %p36 = por %p34, %p35
    %p37 = scmp.ne.s32.totalorder %s23, %s24
    %p38 = scmp.eq.s32.totalorder %s16, 1
    %p39 = por %p37, %p38
    %p41 = scmp.ne.s32.totalorder %s24, %s40
    %p42 = scmp.eq.s32.totalorder %s16, 0
    %p43 = por %p41, %p42
    %s44 = ssub.s32 %s10, %s17
    %p45 = scmp.eq.s32.totalorder %s44, 0
    %s47 = sadd.s32 %s46, 1
    %s48 = scalar_select %p45, %s46, %s47
    %p51 = pneg %p45
    %p52 = scmp.eq.s32.totalorder %s10, 1
    %p53 = por %p51, %p52
    %p54 = scmp.ne.s32.totalorder %s46, %s49
    %p55 = scmp.eq.s32.totalorder %s10, 0
    %p56 = por %p54, %p55
    %p57 = scmp.ne.s32.totalorder %s46, %s49
    %p58 = scmp.eq.s32.totalorder %s15, 1
    %p59 = por %p57, %p58
    %p60 = scmp.ne.s32.totalorder %s49, %s50
    %p61 = scmp.eq.s32.totalorder %s15, 0
    %p62 = por %p60, %p61
    %p63 = scmp.ne.s32.totalorder %s49, %s50
    %p64 = scmp.eq.s32.totalorder %s16, 1
    %p65 = por %p63, %p64
    %p67 = scmp.ne.s32.totalorder %s50, %s66
    %p68 = scmp.eq.s32.totalorder %s16, 0
    %p69 = por %p67, %p68
    %s71 = sadd.s32 %s70, 1
    %p74 = scmp.eq.s32.totalorder %s10, 1
    %p75 = scmp.ne.s32.totalorder %s70, %s72
    %p76 = scmp.eq.s32.totalorder %s10, 0
    %p77 = por %p75, %p76
    %p78 = scmp.ne.s32.totalorder %s70, %s72
    %p79 = scmp.eq.s32.totalorder %s15, 1
    %p80 = por %p78, %p79
    %p81 = scmp.ne.s32.totalorder %s72, %s73
    %p82 = scmp.eq.s32.totalorder %s15, 0
    %p83 = por %p81, %p82
    %p84 = scmp.ne.s32.totalorder %s72, %s73
    %p85 = scmp.eq.s32.totalorder %s16, 1
    %p86 = por %p84, %p85
    %p88 = scmp.ne.s32.totalorder %s73, %s87
    %p89 = scmp.eq.s32.totalorder %s16, 0
    %p90 = por %p88, %p89
    %s92 = sadd.s32 %s91, 1
    %p95 = scmp.eq.s32.totalorder %s10, 1
    %p96 = scmp.ne.s32.totalorder %s91, %s93
    %p97 = scmp.eq.s32.totalorder %s10, 0
    %p98 = por %p96, %p97
    %p99 = scmp.ne.s32.totalorder %s91, %s93
    %p100 = scmp.eq.s32.totalorder %s15, 1
    %p101 = por %p99, %p100
    %p102 = scmp.ne.s32.totalorder %s93, %s94
    %p103 = scmp.eq.s32.totalorder %s15, 0
    %p104 = por %p102, %p103
    %p105 = scmp.ne.s32.totalorder %s93, %s94
    %p106 = scmp.eq.s32.totalorder %s16, 1
    %p107 = por %p105, %p106
    %p109 = scmp.ne.s32.totalorder %s94, %s108
    %p110 = scmp.eq.s32.totalorder %s16, 0
    %p111 = por %p109, %p110
    %s112 = ssub.s32 %s10, %s17
    %p113 = scmp.eq.s32.totalorder %s112, 0
    %s115 = sadd.s32 %s114, 1
    %s116 = scalar_select %p113, %s114, %s115
    %p119 = pneg %p113
    %p120 = scmp.eq.s32.totalorder %s10, 1
    %p121 = por %p119, %p120
    %p122 = scmp.ne.s32.totalorder %s114, %s117
    %p123 = scmp.eq.s32.totalorder %s10, 0
    %p124 = por %p122, %p123
    %p125 = scmp.ne.s32.totalorder %s114, %s117
    %p126 = scmp.eq.s32.totalorder %s15, 1
    %p127 = por %p125, %p126
    %p128 = scmp.ne.s32.totalorder %s117, %s118
    %p129 = scmp.eq.s32.totalorder %s15, 0
    %p130 = por %p128, %p129
    %p131 = scmp.ne.s32.totalorder %s117, %s118
    %p132 = scmp.eq.s32.totalorder %s16, 1
    %p133 = por %p131, %p132
    %p135 = scmp.ne.s32.totalorder %s118, %s134
    %p136 = scmp.eq.s32.totalorder %s16, 0
    %p137 = por %p135, %p136
    %p138 = scmp.le.s32.totalorder 1, %s10
    %p139 = scmp.lt.s32.totalorder %s10, 3
    %p140 = pnand %p138, %p139
    %p141 = pneg %p140
    // Predicated region
    $region9: #{resblock_forward.3} parent=5 // pred_check
      _
    $region10: #{resblock_forward.3} parent=5 // pred_check_branch
      %143 = sbr.rel (%p140) target = $region12
    $region11: #{resblock_forward.3} parent=5 // pred_region
      %s144 = ssub.s32 %s10, 1
      // Predicated region
      $region13: #{resblock_forward.3} parent=11 // pred_check
        %p145 = pneg %p83
      $region14: #{resblock_forward.3} parent=11 // pred_check_branch
        %147 = sbr.rel (%p145) target = $region16
      $region15: #{resblock_forward.3} parent=11 // pred_region
        _
      $region16: #{resblock_forward.3} parent=11 // pred_fallthru
        _
      // Predicated region
      $region17: #{resblock_forward.3} parent=11 // pred_check
        %p148 = pneg %p104
      $region18: #{resblock_forward.3} parent=11 // pred_check_branch
        %150 = sbr.rel (%p148) target = $region20
      $region19: #{resblock_forward.3} parent=11 // pred_region
        _
      $region20: #{resblock_forward.3} parent=11 // pred_fallthru
        _
    $region12: #{resblock_forward.3} parent=5 // pred_fallthru
      _
    %p151 = scmp.lt.s32.totalorder %s10, 2
    // Predicated region
    $region21: #{resblock_forward.3} parent=5 // pred_check
      %p152 = pneg %p151
    $region22: #{resblock_forward.3} parent=5 // pred_check_branch
      %154 = sbr.rel (%p152) target = $region24
    $region23: #{resblock_forward.3} parent=5 // pred_region
      // Predicated region
      $region25: #{resblock_forward.3} parent=23 // pred_check
        %p155 = pneg %p30
      $region26: #{resblock_forward.3} parent=23 // pred_check_branch
        %157 = sbr.rel (%p155) target = $region28
      $region27: #{resblock_forward.3} parent=23 // pred_region
        %p158 = scmp.lt.s32.totalorder %s10, 1
        %s159 = scalar_select %p158, %s10, 1
        %s160 = smul.addr %s159, 2
        %s161 = smul.addr %s160, 4
        %s162 = scalar_lea.vmem %s0, %s161
      $region28: #{resblock_forward.3} parent=23 // pred_fallthru
        _
      // Predicated region
      $region29: #{resblock_forward.3} parent=23 // pred_check
        %p163 = pneg %p56
      $region30: #{resblock_forward.3} parent=23 // pred_check_branch
        %165 = sbr.rel (%p163) target = $region32
      $region31: #{resblock_forward.3} parent=23 // pred_region
        %p166 = scmp.lt.s32.totalorder %s10, 1
        %s167 = scalar_select %p166, %s10, 1
        %s168 = smul.addr %s167, 2
        %s169 = smul.addr %s168, 4
        %s170 = scalar_lea.vmem %s1, %s169
      $region32: #{resblock_forward.3} parent=23 // pred_fallthru
        _
    $region24: #{resblock_forward.3} parent=5 // pred_fallthru
      _
    %p171 = scmp.le.s32.totalorder 1, %s10
    %p172 = scmp.lt.s32.totalorder %s10, 3
    %p173 = pnand %p171, %p172
    %p174 = pneg %p173
    // Predicated region
    $region33: #{resblock_forward.3} parent=5 // pred_check
      _
    $region34: #{resblock_forward.3} parent=5 // pred_check_branch
      %176 = sbr.rel (%p173) target = $region36
    $region35: #{resblock_forward.3} parent=5 // pred_region
      %s177 = ssub.s32 %s10, 1
      %p178 = scmp.lt.s32.totalorder %s15, 1
      %s179 = scalar_select %p178, %s15, 1
      %s180 = smul.addr %s179, 2
      %s181 = smul.addr %s180, 4
      %s182 = scalar_lea.vmem %s0, %s181
      %p183 = pneg %p36
      %p184 = pneg %p33
      %p185 = scmp.lt.s32.totalorder %s15, 1
      %s186 = scalar_select %p185, %s15, 1
      %s187 = smul.addr %s186, 2
      %s188 = smul.addr %s187, 4
      %s189 = scalar_lea.vmem %s1, %s188
      %p190 = pneg %p62
      %p191 = pneg %p59
      %p192 = pneg %p83
      %p193 = pneg %p80
      %p194 = pneg %p104
      %p195 = pneg %p101
      %p196 = pneg %p130
      %p197 = pneg %p127
      %p198 = scmp.lt.s32.totalorder %s15, 1
      %s199 = scalar_select %p198, %s15, 1
      %s200 = smul.addr %s199, 2
      %s201 = smul.addr %s200, 4
      %s202 = scalar_lea.vmem %s4, %s201
      %p203 = scmp.lt.s32.totalorder %s15, 1
      %s204 = scalar_select %p203, %s15, 1
      %s205 = smul.addr %s204, 2
      %s206 = smul.addr %s205, 4
      %s207 = scalar_lea.vmem %s0, %s206
      %p208 = scmp.lt.s32.totalorder %s15, 1
      %s209 = scalar_select %p208, %s15, 1
      %s210 = smul.addr %s209, 2
      %s211 = smul.addr %s210, 4
      %s212 = scalar_lea.vmem %s1, %s211
      %p213 = scmp.lt.s32.totalorder %s15, 1
      %s214 = scalar_select %p213, %s15, 1
      %s215 = smul.addr %s214, 2
      %s216 = smul.addr %s215, 4
      %s217 = scalar_lea.vmem %s4, %s216
      %v218 = vld [vmem:[%s2] sm:$0xf]
      %v219 = vld [vmem:[%s3] sm:$0xf]
      %v220 = vld [vmem:[%s207] sm:$0xff]
      %222 = vset.pattern.permute.xlu0 0
      %223 = vperm.xlu0 %222, %v218
      %v224 = vpop.permute.xlu0 %223
      %v226 = vunpack.c.l.s4 839922192
      %v227 = vunpack.c.0.s8 %v226
      %v228 = vlaneseq
      %v229 = vshrl.u32 %v228, 7
      %v230 = vsub.s32 %v227, %v229
      %v231 = vrot.slane %v224, %v230
      %v233 = vmul.f32 %v220, %v231
      %235 = vset.pattern.permute.xlu0 0
      %236 = vperm.xlu0 %235, %v219
      %v237 = vpop.permute.xlu0 %236
      %v239 = vunpack.c.l.s4 839922192
      %v240 = vunpack.c.0.s8 %v239
      %v241 = vlaneseq
      %v242 = vshrl.u32 %v241, 7
      %v243 = vsub.s32 %v240, %v242
      %v244 = vrot.slane %v237, %v243
      %v246 = vadd.f32 %v233, %v244
      %v247 = vld [vmem:[%s212] sm:$0xff]
      %v248 = vadd.f32 %v246, %v247
      %249 = vst [vmem:[%s217] sm:$0xff] %v248
      %p250 = scmp.lt.s32.totalorder %s15, 1
      %s251 = scalar_select %p250, %s15, 1
      %s252 = smul.addr %s251, 2
      %s253 = smul.addr %s252, 4
      %s254 = scalar_lea.vmem %s4, %s253
      // Predicated region
      $region37: #{resblock_forward.3} parent=35 // pred_check
        %p255 = pneg %p127
      $region38: #{resblock_forward.3} parent=35 // pred_check_branch
        %257 = sbr.rel (%p255) target = $region40
      $region39: #{resblock_forward.3} parent=35 // pred_region
        _
      $region40: #{resblock_forward.3} parent=35 // pred_fallthru
        _
    $region36: #{resblock_forward.3} parent=5 // pred_fallthru
      _
    %p258 = scmp.le.s32.totalorder 2, %s10
    // Predicated region
    $region41: #{resblock_forward.3} parent=5 // pred_check
      %p259 = pneg %p258
    $region42: #{resblock_forward.3} parent=5 // pred_check_branch
      %261 = sbr.rel (%p259) target = $region44
    $region43: #{resblock_forward.3} parent=5 // pred_region
      %s262 = ssub.s32 %s10, 2
      // Predicated region
      $region45: #{resblock_forward.3} parent=43 // pred_check
        %p263 = pneg %p133
      $region46: #{resblock_forward.3} parent=43 // pred_check_branch
        %265 = sbr.rel (%p263) target = $region48
      $region47: #{resblock_forward.3} parent=43 // pred_region
        %p266 = scmp.lt.s32.totalorder %s16, 1
        %s267 = scalar_select %p266, %s16, 1
        %s268 = smul.addr %s267, 2
        %s269 = smul.addr %s268, 4
        %s270 = scalar_lea.vmem %s4, %s269
      $region48: #{resblock_forward.3} parent=43 // pred_fallthru
        _
    $region44: #{resblock_forward.3} parent=5 // pred_fallthru
      _
  $region6: #{resblock_forward.3} parent=0 // loop_footer
    %s14 = sadd.s32 1, %s10
  $region7: #{resblock_forward.3} parent=0 // loop_footer_branch
    %9 = sbr.rel target = $region3
  $region8: #{resblock_forward.3} parent=0 // loop_exit
    _

// kernel: resblock_forward.2
$region0: #{resblock_forward.2}
  #allocation0 [shape = 'u32[]', space=smem, size = 0x4, offset = 0x4, fixed_abs, tag = 'smem constant byte address 0x4 - core index']
  #allocation1 [shape = 'u32[144,128]{1,0:T(1,128)}', space=vmem, size = 0x12000, scoped, tag = 'internal scratch']
  #allocation2 [shape = 'f32[72,256]{1,0:T(8,128)}', space=vmem, size = 0x12000, scoped, tag = 'scratch operand']
  %s0 = inlined_call_operand.vmem [shape: f32[2,1,8,256], index: 0, kind: input, shape index: {}]
  %s1 = inlined_call_operand.vmem [shape: f32[4,72], index: 1, kind: input, shape index: {}]
  %s2 = inlined_call_operand.vmem [shape: f32[9,256], index: 2, kind: input, shape index: {}]
  %s3 = inlined_call_operand.vmem [shape: f32[2,1,4,256], index: 3, kind: output, shape index: {0}]
  %s4 = inlined_call_operand.vmem [shape: f32[2,8,1], index: 4, kind: output, shape index: {1}]
  %5 = xla_tuple %s3, %s4
  %s6 = sld [smem:[#allocation0]]
  $region53: #{resblock_forward.2} parent=0
    _
  %s8 = ssub.s32 1, %s6
  %s9 = scalar_select 0, %s8, %s6
  loop: start=0, step=1, limit=4
  $region2: #{resblock_forward.2} parent=0 // loop_pre_header
    _
  $region3: #{resblock_forward.2} parent=0 // loop_header
    %s11 = sphi 0, %s15
    %p12 = scmp.ge.s32.totalorder %s11, 4
    %s21 = sphi 0, %s23
    %s24 = sphi 0, %s21
    %s25 = sphi 0, %s24
    %s41 = sphi 0, %s25
    %s45 = sphi 0, %s45
    %s47 = sphi 0, %s45
    %s48 = sphi 0, %s47
    %s62 = sphi 0, %s48
    %s66 = sphi 0, %s66
    %s68 = sphi 0, %s66
    %s69 = sphi 0, %s68
    %s83 = sphi 0, %s69
    %s89 = sphi 0, %s91
    %s92 = sphi 0, %s89
    %s93 = sphi 0, %s92
    %s109 = sphi 0, %s93
    %s115 = sphi 0, %s117
    %s118 = sphi 0, %s115
    %s119 = sphi 0, %s118
    %s135 = sphi 0, %s119
  $region4: #{resblock_forward.2} parent=0 // loop_header_branch
    %14 = sbr.rel (%p12) target = $region8
  $region5: #{resblock_forward.2} parent=0 // loop_body
    %s16 = ssub.s32 %s11, 1
    %s17 = ssub.s32 %s11, 2
    %s18 = sadd.s32 %s11, 1
    %s19 = ssub.s32 %s11, %s18
    %p20 = scmp.eq.s32.totalorder %s19, 0
    %s22 = sadd.s32 %s21, 1
    %s23 = scalar_select %p20, %s21, %s22
    %p26 = pneg %p20
    %p27 = scmp.eq.s32.totalorder %s11, 1
    %p28 = por %p26, %p27
    %p29 = scmp.ne.s32.totalorder %s21, %s24
    %p30 = scmp.eq.s32.totalorder %s11, 0
    %p31 = por %p29, %p30
    %p32 = scmp.ne.s32.totalorder %s21, %s24
    %p33 = scmp.eq.s32.totalorder %s16, 1
    %p34 = por %p32, %p33
    %p35 = scmp.ne.s32.totalorder %s24, %s25
    %p36 = scmp.eq.s32.totalorder %s16, 0
    %p37 = por %p35, %p36
    %p38 = scmp.ne.s32.totalorder %s24, %s25
    %p39 = scmp.eq.s32.totalorder %s17, 1
    %p40 = por %p38, %p39
    %p42 = scmp.ne.s32.totalorder %s25, %s41
    %p43 = scmp.eq.s32.totalorder %s17, 0
    %p44 = por %p42, %p43
    %s46 = sadd.s32 %s45, 1
    %p49 = scmp.eq.s32.totalorder %s11, 1
    %p50 = scmp.ne.s32.totalorder %s45, %s47
    %p51 = scmp.eq.s32.totalorder %s11, 0
    %p52 = por %p50, %p51
    %p53 = scmp.ne.s32.totalorder %s45, %s47
    %p54 = scmp.eq.s32.totalorder %s16, 1
    %p55 = por %p53, %p54
    %p56 = scmp.ne.s32.totalorder %s47, %s48
    %p57 = scmp.eq.s32.totalorder %s16, 0
    %p58 = por %p56, %p57
    %p59 = scmp.ne.s32.totalorder %s47, %s48
    %p60 = scmp.eq.s32.totalorder %s17, 1
    %p61 = por %p59, %p60
    %p63 = scmp.ne.s32.totalorder %s48, %s62
    %p64 = scmp.eq.s32.totalorder %s17, 0
    %p65 = por %p63, %p64
    %s67 = sadd.s32 %s66, 1
    %p70 = scmp.eq.s32.totalorder %s11, 1
    %p71 = scmp.ne.s32.totalorder %s66, %s68
    %p72 = scmp.eq.s32.totalorder %s11, 0
    %p73 = por %p71, %p72
    %p74 = scmp.ne.s32.totalorder %s66, %s68
    %p75 = scmp.eq.s32.totalorder %s16, 1
    %p76 = por %p74, %p75
    %p77 = scmp.ne.s32.totalorder %s68, %s69
    %p78 = scmp.eq.s32.totalorder %s16, 0
    %p79 = por %p77, %p78
    %p80 = scmp.ne.s32.totalorder %s68, %s69
    %p81 = scmp.eq.s32.totalorder %s17, 1
    %p82 = por %p80, %p81
    %p84 = scmp.ne.s32.totalorder %s69, %s83
    %p85 = scmp.eq.s32.totalorder %s17, 0
    %p86 = por %p84, %p85
    %s87 = ssub.s32 %s11, %s18
    %p88 = scmp.eq.s32.totalorder %s87, 0
    %s90 = sadd.s32 %s89, 1
    %s91 = scalar_select %p88, %s89, %s90
    %p94 = pneg %p88
    %p95 = scmp.eq.s32.totalorder %s11, 1
    %p96 = por %p94, %p95
    %p97 = scmp.ne.s32.totalorder %s89, %s92
    %p98 = scmp.eq.s32.totalorder %s11, 0
    %p99 = por %p97, %p98
    %p100 = scmp.ne.s32.totalorder %s89, %s92
    %p101 = scmp.eq.s32.totalorder %s16, 1
    %p102 = por %p100, %p101
    %p103 = scmp.ne.s32.totalorder %s92, %s93
    %p104 = scmp.eq.s32.totalorder %s16, 0
    %p105 = por %p103, %p104
    %p106 = scmp.ne.s32.totalorder %s92, %s93
    %p107 = scmp.eq.s32.totalorder %s17, 1
    %p108 = por %p106, %p107
    %p110 = scmp.ne.s32.totalorder %s93, %s109
    %p111 = scmp.eq.s32.totalorder %s17, 0
    %p112 = por %p110, %p111
    %s113 = ssub.s32 %s11, %s18
    %p114 = scmp.eq.s32.totalorder %s113, 0
    %s116 = sadd.s32 %s115, 1
    %s117 = scalar_select %p114, %s115, %s116
    %p120 = pneg %p114
    %p121 = scmp.eq.s32.totalorder %s11, 1
    %p122 = por %p120, %p121
    %p123 = scmp.ne.s32.totalorder %s115, %s118
    %p124 = scmp.eq.s32.totalorder %s11, 0
    %p125 = por %p123, %p124
    %p126 = scmp.ne.s32.totalorder %s115, %s118
    %p127 = scmp.eq.s32.totalorder %s16, 1
    %p128 = por %p126, %p127
    %p129 = scmp.ne.s32.totalorder %s118, %s119
    %p130 = scmp.eq.s32.totalorder %s16, 0
    %p131 = por %p129, %p130
    %p132 = scmp.ne.s32.totalorder %s118, %s119
    %p133 = scmp.eq.s32.totalorder %s17, 1
    %p134 = por %p132, %p133
    %p136 = scmp.ne.s32.totalorder %s119, %s135
    %p137 = scmp.eq.s32.totalorder %s17, 0
    %p138 = por %p136, %p137
    %p139 = scmp.le.s32.totalorder 1, %s11
    %p140 = scmp.lt.s32.totalorder %s11, 3
    %p141 = pnand %p139, %p140
    %p142 = pneg %p141
    // Predicated region
    $region9: #{resblock_forward.2} parent=5 // pred_check
      _
    $region10: #{resblock_forward.2} parent=5 // pred_check_branch
      %144 = sbr.rel (%p141) target = $region12
    $region11: #{resblock_forward.2} parent=5 // pred_region
      %s145 = ssub.s32 %s11, 1
      // Predicated region
      $region13: #{resblock_forward.2} parent=11 // pred_check
        %p146 = pneg %p58
      $region14: #{resblock_forward.2} parent=11 // pred_check_branch
        %148 = sbr.rel (%p146) target = $region16
      $region15: #{resblock_forward.2} parent=11 // pred_region
        _
      $region16: #{resblock_forward.2} parent=11 // pred_fallthru
        _
      // Predicated region
      $region17: #{resblock_forward.2} parent=11 // pred_check
        %p149 = pneg %p79
      $region18: #{resblock_forward.2} parent=11 // pred_check_branch
        %151 = sbr.rel (%p149) target = $region20
      $region19: #{resblock_forward.2} parent=11 // pred_region
        _
      $region20: #{resblock_forward.2} parent=11 // pred_fallthru
        _
    $region12: #{resblock_forward.2} parent=5 // pred_fallthru
      _
    %p152 = scmp.lt.s32.totalorder %s11, 2
    // Predicated region
    $region21: #{resblock_forward.2} parent=5 // pred_check
      %p153 = pneg %p152
    $region22: #{resblock_forward.2} parent=5 // pred_check_branch
      %155 = sbr.rel (%p153) target = $region24
    $region23: #{resblock_forward.2} parent=5 // pred_region
      // Predicated region
      $region25: #{resblock_forward.2} parent=23 // pred_check
        %p156 = pneg %p31
      $region26: #{resblock_forward.2} parent=23 // pred_check_branch
        %158 = sbr.rel (%p156) target = $region28
      $region27: #{resblock_forward.2} parent=23 // pred_region
        %p159 = scmp.lt.s32.totalorder %s11, 1
        %s160 = scalar_select %p159, %s11, 1
        %s161 = smul.addr %s160, 2
        %s162 = smul.addr %s161, 8
        %s163 = scalar_lea.vmem %s0, %s162
      $region28: #{resblock_forward.2} parent=23 // pred_fallthru
        _
    $region24: #{resblock_forward.2} parent=5 // pred_fallthru
      _
    %p164 = scmp.le.s32.totalorder 1, %s11
    %p165 = scmp.lt.s32.totalorder %s11, 3
    %p166 = pnand %p164, %p165
    %p167 = pneg %p166
    // Predicated region
    $region29: #{resblock_forward.2} parent=5 // pred_check
      _
    $region30: #{resblock_forward.2} parent=5 // pred_check_branch
      %169 = sbr.rel (%p166) target = $region32
    $region31: #{resblock_forward.2} parent=5 // pred_region
      %s170 = ssub.s32 %s11, 1
      %p171 = scmp.lt.s32.totalorder %s16, 1
      %s172 = scalar_select %p171, %s16, 1
      %s173 = smul.addr %s172, 2
      %s174 = smul.addr %s173, 8
      %s175 = scalar_lea.vmem %s0, %s174
      %p176 = pneg %p37
      %p177 = pneg %p34
      %p178 = pneg %p58
      %p179 = pneg %p55
      %p180 = pneg %p79
      %p181 = pneg %p76
      %p182 = pneg %p105
      %p183 = pneg %p102
      %p184 = scmp.lt.s32.totalorder %s16, 1
      %s185 = scalar_select %p184, %s16, 1
      %s186 = smul.addr %s185, 2
      %s187 = smul.addr %s186, 4
      %s188 = scalar_lea.vmem %s3, %s187
      %p189 = pneg %p131
      %p190 = pneg %p128
      %p191 = scmp.lt.s32.totalorder %s16, 1
      %s192 = scalar_select %p191, %s16, 1
      %s193 = smul.addr %s192, 8
      %s194 = scalar_lea.vmem %s4, %s193
      %p195 = scmp.lt.s32.totalorder %s16, 1
      %s196 = scalar_select %p195, %s16, 1
      %s197 = smul.addr %s196, 2
      %s198 = smul.addr %s197, 8
      %s199 = scalar_lea.vmem %s0, %s198
      %p200 = scmp.lt.s32.totalorder %s16, 1
      %s201 = scalar_select %p200, %s16, 1
      %s202 = smul.addr %s201, 2
      %s203 = smul.addr %s202, 4
      %s204 = scalar_lea.vmem %s3, %s203
      %p205 = scmp.lt.s32.totalorder %s16, 1
      %s206 = scalar_select %p205, %s16, 1
      %s207 = smul.addr %s206, 8
      %s208 = scalar_lea.vmem %s4, %s207
      %v209 = vld [vmem:[%s199] sm:$0xff]
      %v210 = vld [vmem:[%s199 + $0x8] sm:$0xff]
      %v211 = vld [vmem:[%s2] ss:$8 sm:$0x3]
      %212 = vrot.lane.b32.xlu0 %v209, 17
      %v213 = vpop.permute.xlu0 %212
      %214 = vrot.lane.b32.xlu0 %v210, 17
      %v215 = vpop.permute.xlu0 %214
      %v216 = vlaneseq
      %v217 = vand.u32 %v216, 127
      %vm218 = vcmp.lt.s32.totalorder %v217, 17
      %v219 = vsel %vm218, %v213, %v215
      %v220 = vsel %vm218, %v215, %v213
      %v222 = vlaneseq
      %v223 = vshrl.u32 %v222, 7
      %v224 = vsub.s32 0, %v223
      %v225 = vrot.slane %v211, %v224
      %v226 = vlaneseq
      %v227 = vshrl.u32 %v226, 7
      %v228 = vsub.s32 1, %v227
      %v229 = vrot.slane %v211, %v228
      %v232 = vmul.f32 %v220, %v225
      %v233 = vmul.f32 %v219, %v229
      %234 = vst [vmem:[#allocation2] sm:$0xff] %v232
      %235 = vst [vmem:[#allocation2 + $0x8] sm:$0xff] %v233
      %s236 = scalar_lea.vmem %s2, 1
      %v237 = vld [vmem:[%s236] ss:$8 sm:$0x3]
      %238 = vrot.lane.b32.xlu0 %v209, 16
      %v239 = vpop.permute.xlu0 %238
      %240 = vrot.lane.b32.xlu0 %v210, 16
      %v241 = vpop.permute.xlu0 %240
      %vm242 = vcmp.lt.s32.totalorder %v217, 16
      %v243 = vsel %vm242, %v239, %v241
      %v244 = vsel %vm242, %v241, %v239
      %v246 = vlaneseq
      %v247 = vshrl.u32 %v246, 7
      %v248 = vsub.s32 0, %v247
      %v249 = vrot.slane %v237, %v248
      %v250 = vlaneseq
      %v251 = vshrl.u32 %v250, 7
      %v252 = vsub.s32 1, %v251
      %v253 = vrot.slane %v237, %v252
      %v256 = vmul.f32 %v244, %v249
      %v257 = vmul.f32 %v243, %v253
      %258 = vst [vmem:[#allocation2 + $0x10] sm:$0xff] %v256
      %259 = vst [vmem:[#allocation2 + $0x18] sm:$0xff] %v257
      %s260 = scalar_lea.vmem %s2, 2
      %v261 = vld [vmem:[%s260] ss:$8 sm:$0x3]
      %262 = vrot.lane.b32.xlu0 %v209, 15
      %v263 = vpop.permute.xlu0 %262
      %264 = vrot.lane.b32.xlu0 %v210, 15
      %v265 = vpop.permute.xlu0 %264
      %vm266 = vcmp.lt.s32.totalorder %v217, 15
      %v267 = vsel %vm266, %v263, %v265
      %v268 = vsel %vm266, %v265, %v263
      %v270 = vlaneseq
      %v271 = vshrl.u32 %v270, 7
      %v272 = vsub.s32 0, %v271
      %v273 = vrot.slane %v261, %v272
      %v274 = vlaneseq
      %v275 = vshrl.u32 %v274, 7
      %v276 = vsub.s32 1, %v275
      %v277 = vrot.slane %v261, %v276
      %v280 = vmul.f32 %v268, %v273
      %v281 = vmul.f32 %v267, %v277
      %282 = vst [vmem:[#allocation2 + $0x20] sm:$0xff] %v280
      %283 = vst [vmem:[#allocation2 + $0x28] sm:$0xff] %v281
      %s284 = scalar_lea.vmem %s2, 3
      %v285 = vld [vmem:[%s284] ss:$8 sm:$0x3]
      %286 = vrot.lane.b32.xlu0 %v209, 1
      %v287 = vpop.permute.xlu0 %286
      %288 = vrot.lane.b32.xlu0 %v210, 1
      %v289 = vpop.permute.xlu0 %288
      %vm290 = vcmp.lt.s32.totalorder %v217, 1
      %v291 = vsel %vm290, %v287, %v289
      %v292 = vsel %vm290, %v289, %v287
      %v294 = vlaneseq
      %v295 = vshrl.u32 %v294, 7
      %v296 = vsub.s32 0, %v295
      %v297 = vrot.slane %v285, %v296
      %v298 = vlaneseq
      %v299 = vshrl.u32 %v298, 7
      %v300 = vsub.s32 1, %v299
      %v301 = vrot.slane %v285, %v300
      %v304 = vmul.f32 %v292, %v297
      %v305 = vmul.f32 %v291, %v301
      %306 = vst [vmem:[#allocation2 + $0x30] sm:$0xff] %v304
      %307 = vst [vmem:[#allocation2 + $0x38] sm:$0xff] %v305
      %s308 = scalar_lea.vmem %s2, 4
      %v309 = vld [vmem:[%s308] ss:$8 sm:$0x3]
      %v311 = vlaneseq
      %v312 = vshrl.u32 %v311, 7
      %v313 = vsub.s32 0, %v312
      %v314 = vrot.slane %v309, %v313
      %v315 = vlaneseq
      %v316 = vshrl.u32 %v315, 7
      %v317 = vsub.s32 1, %v316
      %v318 = vrot.slane %v309, %v317
      %v321 = vmul.f32 %v209, %v314
      %v322 = vmul.f32 %v210, %v318
      %323 = vst [vmem:[#allocation2 + $0x40] sm:$0xff] %v321
      %324 = vst [vmem:[#allocation2 + $0x48] sm:$0xff] %v322
      %s325 = scalar_lea.vmem %s2, 5
      %v326 = vld [vmem:[%s325] ss:$8 sm:$0x3]
      %327 = vrot.lane.b32.xlu0 %v209, 127
      %v328 = vpop.permute.xlu0 %327
      %329 = vrot.lane.b32.xlu0 %v210, 127
      %v330 = vpop.permute.xlu0 %329
      %vm331 = vcmp.lt.s32.totalorder %v217, 127
      %v332 = vsel %vm331, %v328, %v330
      %v333 = vsel %vm331, %v330, %v328
      %v335 = vlaneseq
      %v336 = vshrl.u32 %v335, 7
      %v337 = vsub.s32 0, %v336
      %v338 = vrot.slane %v326, %v337
      %v339 = vlaneseq
      %v340 = vshrl.u32 %v339, 7
      %v341 = vsub.s32 1, %v340
      %v342 = vrot.slane %v326, %v341
      %v345 = vmul.f32 %v332, %v338
      %v346 = vmul.f32 %v333, %v342
      %347 = vst [vmem:[#allocation2 + $0x50] sm:$0xff] %v345
      %348 = vst [vmem:[#allocation2 + $0x58] sm:$0xff] %v346
      %s349 = scalar_lea.vmem %s2, 6
      %v350 = vld [vmem:[%s349] ss:$8 sm:$0x3]
      %351 = vrot.lane.b32.xlu0 %v209, 113
      %v352 = vpop.permute.xlu0 %351
      %353 = vrot.lane.b32.xlu0 %v210, 113
      %v354 = vpop.permute.xlu0 %353
      %vm355 = vcmp.lt.s32.totalorder %v217, 113
      %v356 = vsel %vm355, %v352, %v354
      %v357 = vsel %vm355, %v354, %v352
      %v359 = vlaneseq
      %v360 = vshrl.u32 %v359, 7
      %v361 = vsub.s32 0, %v360
      %v362 = vrot.slane %v350, %v361
      %v363 = vlaneseq
      %v364 = vshrl.u32 %v363, 7
      %v365 = vsub.s32 1, %v364
      %v366 = vrot.slane %v350, %v365
      %v369 = vmul.f32 %v356, %v362
      %v370 = vmul.f32 %v357, %v366
      %371 = vst [vmem:[#allocation2 + $0x60] sm:$0xff] %v369
      %372 = vst [vmem:[#allocation2 + $0x68] sm:$0xff] %v370
      %s373 = scalar_lea.vmem %s2, 7
      %v374 = vld [vmem:[%s373] ss:$8 sm:$0x3]
      %375 = vrot.lane.b32.xlu0 %v209, 112
      %v376 = vpop.permute.xlu0 %375
      %377 = vrot.lane.b32.xlu0 %v210, 112
      %v378 = vpop.permute.xlu0 %377
      %vm379 = vcmp.lt.s32.totalorder %v217, 112
      %v380 = vsel %vm379, %v376, %v378
      %v381 = vsel %vm379, %v378, %v376
      %v383 = vlaneseq
      %v384 = vshrl.u32 %v383, 7
      %v385 = vsub.s32 0, %v384
      %v386 = vrot.slane %v374, %v385
      %v387 = vlaneseq
      %v388 = vshrl.u32 %v387, 7
      %v389 = vsub.s32 1, %v388
      %v390 = vrot.slane %v374, %v389
      %v393 = vmul.f32 %v380, %v386
      %v394 = vmul.f32 %v381, %v390
      %395 = vst [vmem:[#allocation2 + $0x70] sm:$0xff] %v393
      %396 = vst [vmem:[#allocation2 + $0x78] sm:$0xff] %v394
      %s397 = scalar_lea.vmem %s2, 16
      %v398 = vld [vmem:[%s397] ss:$8 sm:$0x3]
      %399 = vrot.lane.b32.xlu0 %v209, 111
      %v400 = vpop.permute.xlu0 %399
      %401 = vrot.lane.b32.xlu0 %v210, 111
      %v402 = vpop.permute.xlu0 %401
      %vm403 = vcmp.lt.s32.totalorder %v217, 111
      %v404 = vsel %vm403, %v400, %v402
      %v405 = vsel %vm403, %v402, %v400
      %v407 = vlaneseq
      %v408 = vshrl.u32 %v407, 7
      %v409 = vsub.s32 0, %v408
      %v410 = vrot.slane %v398, %v409
      %v411 = vlaneseq
      %v412 = vshrl.u32 %v411, 7
      %v413 = vsub.s32 1, %v412
      %v414 = vrot.slane %v398, %v413
      %v417 = vmul.f32 %v404, %v410
      %v418 = vmul.f32 %v405, %v414
      %419 = vst [vmem:[#allocation2 + $0x80] sm:$0xff] %v417
      %420 = vst [vmem:[#allocation2 + $0x88] sm:$0xff] %v418
      %v421 = vld [vmem:[%s1] sm:$0xf]
      %v422 = vld [vmem:[#allocation2] sm:$0xff]
      %v423 = vld [vmem:[#allocation2 + $0x8] sm:$0xff]
      %v424 = vld [vmem:[#allocation2 + $0x10] sm:$0xff]
      %v425 = vld [vmem:[#allocation2 + $0x18] sm:$0xff]
      %v426 = vld [vmem:[#allocation2 + $0x20] sm:$0xff]
      %v427 = vld [vmem:[#allocation2 + $0x28] sm:$0xff]
      %v428 = vld [vmem:[#allocation2 + $0x30] sm:$0xff]
      %v429 = vld [vmem:[#allocation2 + $0x38] sm:$0xff]
      %v430 = vld [vmem:[#allocation2 + $0x40] sm:$0xff]
      %v431 = vld [vmem:[#allocation2 + $0x48] sm:$0xff]
      %v432 = vld [vmem:[#allocation2 + $0x50] sm:$0xff]
      %v433 = vld [vmem:[#allocation2 + $0x58] sm:$0xff]
      %v434 = vld [vmem:[#allocation2 + $0x60] sm:$0xff]
      %v435 = vld [vmem:[#allocation2 + $0x68] sm:$0xff]
      %v436 = vld [vmem:[#allocation2 + $0x70] sm:$0xff]
      %v437 = vld [vmem:[#allocation2 + $0x78] sm:$0xff]
      %v438 = vld [vmem:[#allocation2 + $0x80] sm:$0xff]
      %v439 = vld [vmem:[#allocation2 + $0x88] sm:$0xff]
      %vm440 = vcmask 588800
      %v442 = vsel %vm440, %v421, 0
      %444 = vmatprep.subr.mxu0 %v423
      %445 = vmatpush1.msra.mxu0 %v422
      %446 = vmatprep.subr.mxu0 %v425
      %447 = vmatpush1.msra.mxu0 %v424
      %448 = vmatprep.subr.mxu0 %v427
      %449 = vmatpush1.msra.mxu0 %v426
      %450 = vmatprep.subr.mxu0 %v429
      %451 = vmatpush1.msra.mxu0 %v428
      %452 = vmatprep.subr.mxu0 %v431
      %453 = vmatpush1.msra.mxu0 %v430
      %454 = vmatprep.subr.mxu0 %v433
      %455 = vmatpush1.msra.mxu0 %v432
      %456 = vmatprep.subr.mxu0 %v435
      %457 = vmatpush1.msra.mxu0 %v434
      %458 = vmatprep.subr.mxu0 %v437
      %459 = vmatpush1.msra.mxu0 %v436
      %460 = vmatprep.subr.mxu0 %v439
      %461 = vmatpush1.msra.mxu0 %v438
      %462 = vmatprep.subr.mxu0 0.0
      %463 = vmatpush1.msra.mxu0 0.0
      %464 = vmatprep.subr.mxu0 0.0
      %465 = vmatpush1.msra.mxu0 0.0
      %466 = vmatprep.subr.mxu0 0.0
      %467 = vmatpush1.msra.mxu0 0.0
      %468 = vmatprep.subr.mxu0 0.0
      %469 = vmatpush1.msra.mxu0 0.0
      %470 = vmatprep.subr.mxu0 0.0
      %471 = vmatpush1.msra.mxu0 0.0
      %472 = vmatprep.subr.mxu0 0.0
      %473 = vmatpush1.msra.mxu0 0.0
      %474 = vmatprep.subr.mxu0 0.0
      %475 = vmatpush1.msra.mxu0 0.0
      %476 = vmatprep.subr.mxu0 0.0
      %477 = vmatpush1.msra.mxu0 0.0
      %478 = vmatprep.subr.mxu0 0.0
      %479 = vmatpush1.msra.mxu0 0.0
      %480 = vmatprep.subr.mxu0 0.0
      %481 = vmatpush1.msra.mxu0 0.0
      %482 = vmatprep.subr.mxu0 0.0
      %483 = vmatpush1.msra.mxu0 0.0
      %484 = vmatprep.subr.mxu0 0.0
      %485 = vmatpush1.msra.mxu0 0.0
      %486 = vmatprep.subr.mxu0 0.0
      %487 = vmatpush1.msra.mxu0 0.0
      %488 = vmatprep.subr.mxu0 0.0
      %489 = vmatpush1.msra.mxu0 0.0
      %490 = vmatprep.subr.mxu0 0.0
      %491 = vmatpush1.msra.mxu0 0.0
      %492 = vmatprep.subr.mxu0 0.0
      %493 = vmatpush1.msra.mxu0 0.0
      %494 = vmatprep.subr.mxu0 0.0
      %495 = vmatpush1.msra.mxu0 0.0
      %496 = vmatprep.subr.mxu0 0.0
      %497 = vmatpush1.msra.mxu0 0.0
      %498 = vmatprep.subr.mxu0 0.0
      %499 = vmatpush1.msra.mxu0 0.0
      %500 = vmatprep.subr.mxu0 0.0
      %501 = vmatpush1.msra.mxu0 0.0
      %502 = vmatprep.subr.mxu0 0.0
      %503 = vmatpush1.msra.mxu0 0.0
      %504 = vmatprep.subr.mxu0 0.0
      %505 = vmatpush1.msra.mxu0 0.0
      %506 = vmatprep.subr.mxu0 0.0
      %507 = vmatpush1.msra.mxu0 0.0
      %508 = vmatprep.mubr.f32.mxu0 0.0
      %509 = vmatmul.mubr.f32.gmra.mrb[0].mxu0 %v442
      %v510 = vpop.f32.mrb[0].mxu0
      %v511 = vadd.f32 0.0, %v510
      %v512 = vpop.f32.mrb[0].mxu0
      %v513 = vadd.f32 0.0, %v512
      %514 = vdwg.mxu0
      %v517 = vcombine.low %v511, %v513
      %519 = vst [vmem:[%s204] sm:$0xff] %v517
      %vm520 = vcmask 1043456
      %v521 = vsel %vm520, %v511, 0.0
      %v522 = vsel %vm520, %v513, 0.0
      %v523 = vadd.f32 %v521, %v522
      %524 = vadd.xlane.f32.xlu0 %v523
      %v525 = vpop.xlane.xlu0 %524
      %vm526 = vcmask 3072
      %527 = vst.msk [vmem:[%s208] sm:$0xf] %vm526, %v525
      %v528 = vmul.f32 %v511, %v511
      %v529 = vmul.f32 %v513, %v513
      %v530 = vsel %vm520, %v528, 0.0
      %v531 = vsel %vm520, %v529, 0.0
      %v532 = vadd.f32 %v530, %v531
      %533 = vadd.xlane.f32.xlu0 %v532
      %v534 = vpop.xlane.xlu0 %533
      %535 = vst.msk [vmem:[%s208 + $0x4] sm:$0xf] %vm526, %v534
      %p536 = scmp.lt.s32.totalorder %s16, 1
      %s537 = scalar_select %p536, %s16, 1
      %s538 = smul.addr %s537, 2
      %s539 = smul.addr %s538, 4
      %s540 = scalar_lea.vmem %s3, %s539
      %p541 = scmp.lt.s32.totalorder %s16, 1
      %s542 = scalar_select %p541, %s16, 1
      %s543 = smul.addr %s542, 8
      %s544 = scalar_lea.vmem %s4, %s543
      // Predicated region
      $region33: #{resblock_forward.2} parent=31 // pred_check
        %p545 = pneg %p102
      $region34: #{resblock_forward.2} parent=31 // pred_check_branch
        %547 = sbr.rel (%p545) target = $region36
      $region35: #{resblock_forward.2} parent=31 // pred_region
        _
      $region36: #{resblock_forward.2} parent=31 // pred_fallthru
        _
      // Predicated region
      $region37: #{resblock_forward.2} parent=31 // pred_check
        %p548 = pneg %p128
      $region38: #{resblock_forward.2} parent=31 // pred_check_branch
        %550 = sbr.rel (%p548) target = $region40
      $region39: #{resblock_forward.2} parent=31 // pred_region
        _
      $region40: #{resblock_forward.2} parent=31 // pred_fallthru
        _
    $region32: #{resblock_forward.2} parent=5 // pred_fallthru
      _
    %p551 = scmp.le.s32.totalorder 2, %s11
    // Predicated region
    $region41: #{resblock_forward.2} parent=5 // pred_check
      %p552 = pneg %p551
    $region42: #{resblock_forward.2} parent=5 // pred_check_branch
      %554 = sbr.rel (%p552) target = $region44
    $region43: #{resblock_forward.2} parent=5 // pred_region
      %s555 = ssub.s32 %s11, 2
      // Predicated region
      $region45: #{resblock_forward.2} parent=43 // pred_check
        %p556 = pneg %p108
      $region46: #{resblock_forward.2} parent=43 // pred_check_branch
        %558 = sbr.rel (%p556) target = $region48
      $region47: #{resblock_forward.2} parent=43 // pred_region
        %p559 = scmp.lt.s32.totalorder %s17, 1
        %s560 = scalar_select %p559, %s17, 1
        %s561 = smul.addr %s560, 2
        %s562 = smul.addr %s561, 4
        %s563 = scalar_lea.vmem %s3, %s562
      $region48: #{resblock_forward.2} parent=43 // pred_fallthru
        _
      // Predicated region
      $region49: #{resblock_forward.2} parent=43 // pred_check
        %p564 = pneg %p134
      $region50: #{resblock_forward.2} parent=43 // pred_check_branch
        %566 = sbr.rel (%p564) target = $region52
      $region51: #{resblock_forward.2} parent=43 // pred_region
        %p567 = scmp.lt.s32.totalorder %s17, 1
        %s568 = scalar_select %p567, %s17, 1
        %s569 = smul.addr %s568, 8
        %s570 = scalar_lea.vmem %s4, %s569
      $region52: #{resblock_forward.2} parent=43 // pred_fallthru
        _
    $region44: #{resblock_forward.2} parent=5 // pred_fallthru
      _
  $region6: #{resblock_forward.2} parent=0 // loop_footer
    %s15 = sadd.s32 1, %s11
  $region7: #{resblock_forward.2} parent=0 // loop_footer_branch
    %10 = sbr.rel target = $region3
  $region8: #{resblock_forward.2} parent=0 // loop_exit
    _

</llo_original>
